<compile_context>
chip_gen: v6e
topology: v6e:2x2x1
jax: 0.10.0
libtpu: 0.0.40
codegen_flags: <defaults>
</compile_context>

<pallas_src>
import jax
import jax.numpy as jnp
from jax.experimental import pallas as pl
from jax.experimental.pallas import tpu as pltpu


def _round_up(x, m):
    return ((x + m - 1) // m) * m


def _cdiv(a, b):
    return -(-a // b)


def _sublane_align(dtype):
    # 32-bit dtypes tile as (8, 128); sub-32-bit dtypes pack along sublanes,
    # so bf16 needs 16-row and int8/fp8 need 32-row alignment.
    itemsize = jnp.dtype(dtype).itemsize
    return max(8, (8 * 4) // max(1, itemsize))


def _choose_tile(dim, t_max, align):
    """Pick a tile <= t_max (aligned) that divides round_up(dim, tile) with
    at most `align - 1` elements of padding in this dimension."""
    dim_a = _round_up(dim, align)
    t_max = max(align, min(t_max, dim_a))
    n_tiles = _cdiv(dim_a, t_max)
    return _round_up(_cdiv(dim_a, n_tiles), align)


def matmul_kernel_direct(a_ref, b_ref, o_ref):
    # Output dtype == accumulation dtype: accumulate directly into the output
    # block. Correct only because the output index_map ignores k, k is the
    # innermost grid axis, and that axis is marked "arbitrary" (so the block
    # stays VMEM-resident across the k loop). Do not reorder the grid.
    @pl.when(pl.program_id(2) == 0)
    def _():
        o_ref[...] = jnp.zeros_like(o_ref)

    o_ref[...] += jnp.dot(
        a_ref[...], b_ref[...], preferred_element_type=o_ref.dtype
    )


def matmul_kernel_acc(a_ref, b_ref, o_ref, acc_ref):
    # Narrow output dtype (bf16 / fp8 / ...): accumulate in a wide scratch.
    @pl.when(pl.program_id(2) == 0)
    def _():
        acc_ref[...] = jnp.zeros_like(acc_ref)

    acc_ref[...] += jnp.dot(
        a_ref[...], b_ref[...], preferred_element_type=acc_ref.dtype
    )

    @pl.when(pl.program_id(2) == pl.num_programs(2) - 1)
    def _():
        o_ref[...] = acc_ref[...].astype(o_ref.dtype)


def pallas_matmul(ipt, weight, *, tm_max=None, tn_max=None, tk_max=512):
    M, K = ipt.shape
    K2, N = weight.shape
    assert K == K2, "inner dims must match"
    out_dtype = jnp.result_type(ipt.dtype, weight.dtype)

    # TODO(synk): integer inputs are accumulated in int32 here; v7x's MXU has
    # no integer path, so int matmuls may lower poorly — intended use is float.
    if jnp.issubdtype(out_dtype, jnp.floating):
        acc_dtype = jnp.float32
    else:
        acc_dtype = jnp.int32

    in_itemsize = max(jnp.dtype(ipt.dtype).itemsize, jnp.dtype(weight.dtype).itemsize)
    if tm_max is None:
        tm_max = 1024 if in_itemsize >= 4 else 1536
    if tn_max is None:
        tn_max = 1024 if in_itemsize >= 4 else 1536

    # Dtype-aware alignment:
    #   A[M, K]: sublane=M, lane=K(128)   B[K, N]: sublane=K, lane=N(128)
    #   O[M, N]: sublane=M, lane=N(128)
    # tk is a multiple of 128 which also covers B's sublane packing.
    sub_m = max(_sublane_align(ipt.dtype), _sublane_align(out_dtype))
    tm = _choose_tile(M, tm_max, sub_m)
    tn = _choose_tile(N, tn_max, 128)
    tk = _choose_tile(K, tk_max, 128)

    # Megacore (v7x has 2 TensorCores): make sure the parallel (i, j) axes have
    # at least 2 output blocks when the problem is big enough to split.
    if (_round_up(M, tm) // tm) * (_round_up(N, tn) // tn) == 1:
        if _round_up(M, sub_m) > sub_m and tm >= 2 * sub_m:
            tm = _choose_tile(M, tm // 2, sub_m)
        elif _round_up(N, 128) > 128 and tn >= 2 * 128:
            tn = _choose_tile(N, tn // 2, 128)

    Mp, Np, Kp = _round_up(M, tm), _round_up(N, tn), _round_up(K, tk)

    # Zero-pad only when genuinely ragged (padding is < one alignment unit per
    # dim thanks to _choose_tile); aligned shapes take the zero-copy path.
    a = ipt if (Mp == M and Kp == K) else jnp.pad(ipt, ((0, Mp - M), (0, Kp - K)))
    b = weight if (Kp == K and Np == N) else jnp.pad(weight, ((0, Kp - K), (0, Np - N)))

    grid = (Mp // tm, Np // tn, Kp // tk)

    direct = out_dtype == acc_dtype
    if direct:
        kernel = matmul_kernel_direct
        scratch_shapes = []
    else:
        kernel = matmul_kernel_acc
        scratch_shapes = [pltpu.VMEM((tm, tn), acc_dtype)]

    # Scoped VMEM: double-buffered inputs + output block + optional scratch,
    # ~2x headroom, capped at 48 MiB (< 64 MiB v7x physical, leaves room for
    # Mosaic internal scratch / semaphores).
    isz_a = jnp.dtype(a.dtype).itemsize
    isz_b = jnp.dtype(b.dtype).itemsize
    isz_o = jnp.dtype(out_dtype).itemsize
    vmem_need = (
        2 * (tm * tk * isz_a + tk * tn * isz_b)
        + 2 * tm * tn * isz_o
        + (0 if direct else tm * tn * jnp.dtype(acc_dtype).itemsize)
    )
    vmem_limit = int(min(max(2 * vmem_need, 32 * 1024 * 1024), 48 * 1024 * 1024))

    cost = pl.CostEstimate(
        flops=2 * Mp * Np * Kp,
        bytes_accessed=Mp * Kp * isz_a * grid[1]
        + Kp * Np * isz_b * grid[0]
        + Mp * Np * isz_o,
        transcendentals=0,
    )

    out = pl.pallas_call(
        kernel,
        out_shape=jax.ShapeDtypeStruct((Mp, Np), out_dtype),
        grid_spec=pltpu.PrefetchScalarGridSpec(
            num_scalar_prefetch=0,
            grid=grid,
            in_specs=[
                pl.BlockSpec((tm, tk), lambda i, j, k: (i, k)),
                pl.BlockSpec((tk, tn), lambda i, j, k: (k, j)),
            ],
            out_specs=pl.BlockSpec((tm, tn), lambda i, j, k: (i, j)),
            scratch_shapes=scratch_shapes,
        ),
        compiler_params=pltpu.CompilerParams(
            # k must stay innermost + "arbitrary": the output block (and the
            # direct-accumulation path) relies on it being VMEM-resident
            # across the reduction.
            dimension_semantics=("parallel", "parallel", "arbitrary"),
            vmem_limit_bytes=vmem_limit,
        ),
        cost_estimate=cost,
    )(a, b)

    if Mp != M or Np != N:
        out = out[:M, :N]
    return out


class LinearPallas:
    """JAX/Pallas port of the PyTorch `Linear` module: stores `ipt` at
    construction time and computes matmul(ipt, weight) in forward."""

    def __init__(self, ipt):
        self.ipt = ipt

    def __call__(self, weight):
        return pallas_matmul(self.ipt, weight)


if __name__ == "__main__":
    key = jax.random.PRNGKey(0)
    k_ipt, k_w, k_ipt2, k_w2, k_ipt3, k_w3 = jax.random.split(key, 6)

    # Small shapes consistent with a plain 2-D matmul.
    M, K, N = 8, 32, 16
    ipt = jax.random.normal(k_ipt, (M, K), dtype=jnp.float32)
    weight = jax.random.normal(k_w, (K, N), dtype=jnp.float32)

    module = LinearPallas(ipt)
    out = jax.block_until_ready(module(weight))
    ref = jnp.matmul(ipt, weight)
    assert out.shape == (M, N)
    assert jnp.allclose(out, ref, atol=1e-5, rtol=1e-5)

    # Non-tile-divisible shapes exercise the padding / K-tail / megacore split.
    M2, K2, N2 = 100, 300, 200
    ipt2 = jax.random.normal(k_ipt2, (M2, K2), dtype=jnp.float32)
    weight2 = jax.random.normal(k_w2, (K2, N2), dtype=jnp.float32)
    out2 = jax.block_until_ready(LinearPallas(ipt2)(weight2))
    ref2 = jnp.matmul(ipt2, weight2)
    assert out2.shape == (M2, N2)
    assert jnp.allclose(out2, ref2, atol=1e-4, rtol=1e-4)

    # bf16 exercises the scratch-accumulator path and 16-row sublane alignment.
    M3, K3, N3 = 128, 256, 256
    ipt3 = jax.random.normal(k_ipt3, (M3, K3), dtype=jnp.float32).astype(jnp.bfloat16)
    weight3 = jax.random.normal(k_w3, (K3, N3), dtype=jnp.float32).astype(jnp.bfloat16)
    out3 = jax.block_until_ready(LinearPallas(ipt3)(weight3))
    ref3 = jnp.matmul(ipt3.astype(jnp.float32), weight3.astype(jnp.float32))
    assert out3.shape == (M3, N3)
    assert jnp.allclose(out3.astype(jnp.float32), ref3, atol=2e-1, rtol=2e-2)

    print("KERNEL_OK")
</pallas_src>

<mosaic_0001>
module attributes {stable_mosaic.version = 11 : i64} {
  func.func @matmul_kernel_direct(%arg0: i32, %arg1: i32, %arg2: i32, %arg3: memref<8x128xf32, #tpu.memory_space<vmem>>, %arg4: memref<128x128xf32, #tpu.memory_space<vmem>>, %arg5: memref<8x128xf32, #tpu.memory_space<vmem>>) attributes {dimension_semantics = [#tpu.dimension_semantics<parallel>, #tpu.dimension_semantics<parallel>, #tpu.dimension_semantics<arbitrary>], iteration_bounds = array<i64: 1, 1, 1>, scalar_prefetch = 0 : i64, scratch_operands = 0 : i64, tpu.core_type = #tpu.core_type<tc>, window_params = [{transform_indices = @transform_0, window_bounds = array<i64: 8, 128>}, {transform_indices = @transform_1, window_bounds = array<i64: 128, 128>}, {transform_indices = @transform_2, window_bounds = array<i64: 8, 128>}]} {
    %c0_i32 = arith.constant 0 : i32
    %0 = arith.cmpi eq, %arg2, %c0_i32 : i32
    %1 = arith.extui %0 : i1 to i32
    %c0_i32_0 = arith.constant 0 : i32
    %2 = arith.cmpi ne, %1, %c0_i32_0 : i32
    scf.if %2 {
      %cst_8 = arith.constant 0.000000e+00 : f32
      %9 = vector.broadcast %cst_8 : f32 to vector<8x128xf32>
      %c0_9 = arith.constant 0 : index
      %c0_10 = arith.constant 0 : index
      %10 = vector.load %arg5[%c0_9, %c0_10] : memref<8x128xf32, #tpu.memory_space<vmem>>, vector<8x128xf32>
      tpu.vector_store %arg5[%c0_9, %c0_10], %9 {strides = array<i32>} : memref<8x128xf32, #tpu.memory_space<vmem>>, vector<8x128xf32>,
    } else {
    }
    %c0 = arith.constant 0 : index
    %c0_1 = arith.constant 0 : index
    %3 = vector.load %arg5[%c0, %c0_1] : memref<8x128xf32, #tpu.memory_space<vmem>>, vector<8x128xf32>
    %c0_2 = arith.constant 0 : index
    %c0_3 = arith.constant 0 : index
    %4 = vector.load %arg3[%c0_2, %c0_3] : memref<8x128xf32, #tpu.memory_space<vmem>>, vector<8x128xf32>
    %c0_4 = arith.constant 0 : index
    %c0_5 = arith.constant 0 : index
    %5 = vector.load %arg4[%c0_4, %c0_5] : memref<128x128xf32, #tpu.memory_space<vmem>>, vector<128x128xf32>
    %cst = arith.constant dense<0.000000e+00> : vector<8x128xf32>
    %6 = tpu.matmul %4, %5, %cst {dimension_numbers = #tpu.dot_dimension_numbers<[1], [0], [0], [1], [0, 0, 1, 1], [], []>} : vector<8x128xf32>, vector<128x128xf32>, vector<8x128xf32> -> vector<8x128xf32>
    %7 = arith.addf %3, %6 : vector<8x128xf32>
    %c0_6 = arith.constant 0 : index
    %c0_7 = arith.constant 0 : index
    %8 = vector.load %arg5[%c0_6, %c0_7] : memref<8x128xf32, #tpu.memory_space<vmem>>, vector<8x128xf32>
    tpu.vector_store %arg5[%c0_6, %c0_7], %7 {strides = array<i32>} : memref<8x128xf32, #tpu.memory_space<vmem>>, vector<8x128xf32>,
    return
  }
  func.func @transform_0(%arg0: i32, %arg1: i32, %arg2: i32) -> (i32, i32) {
    %c0_i32 = arith.constant 0 : i32
    return %arg0, %arg2 : i32, i32
  }
  func.func @transform_1(%arg0: i32, %arg1: i32, %arg2: i32) -> (i32, i32) {
    %c0_i32 = arith.constant 0 : i32
    return %arg2, %arg1 : i32, i32
  }
  func.func @transform_2(%arg0: i32, %arg1: i32, %arg2: i32) -> (i32, i32) {
    %c0_i32 = arith.constant 0 : i32
    return %arg0, %arg1 : i32, i32
  }
}

</mosaic_0001>

<llo_original>
// kernel: tpu_custom_call.1
$region0: #{tpu_custom_call.1}
  #allocation0 [shape = 'u32[]', space=smem, size = 0x4, offset = 0x4, fixed_abs, tag = 'smem constant byte address 0x4 - core index']
  #allocation1 [shape = 'u32[144,128]{1,0:T(1,128)}', space=vmem, size = 0x12000, scoped, tag = 'internal scratch']
  %s0 = inlined_call_operand.hbm [shape: f32[8,128], index: 0, kind: input, shape index: {}]
  %s1 = inlined_call_operand.hbm [shape: f32[128,128], index: 1, kind: input, shape index: {}]
  %s2 = inlined_call_operand.hbm [shape: f32[8,128], index: 2, kind: output, shape index: {}]
  %s3 = sld [smem:[#allocation0]]
  $region30: #{tpu_custom_call.1} parent=0
    _
  %s5 = ssub.s32 1, %s3
  %s6 = scalar_select 0, %s5, %s3
  $region1: #{tpu_custom_call.1} parent=0
    #allocation2 [shape = 'u8[4096]{0}', space=vmem, size = 0x1000, scoped, tag = 'input window, operand 0, single buffered']
    #allocation3 [shape = 's32[1]{0}', space=sflag, size = 0x4, scoped, tag = 'scoped memory for tpu_custom_call.1']
    #allocation4 [shape = 's32[1]{0}', space=sflag, size = 0x4, scoped, tag = 'scoped memory for tpu_custom_call.1']
    #allocation5 [shape = 'u8[65536]{0}', space=vmem, size = 0x10000, scoped, tag = 'input window, operand 1, single buffered']
    #allocation6 [shape = 's32[1]{0}', space=sflag, size = 0x4, scoped, tag = 'scoped memory for tpu_custom_call.1']
    #allocation7 [shape = 'u8[4096]{0}', space=vmem, size = 0x1000, scoped, tag = 'output window, operand 0, single buffered']
    %7 = vsyncpa [#allocation3], 0
    %8 = vsyncpa [#allocation6], 0
    %9 = vsyncpa [#allocation4], 0
    // Predicated region
    $region2: #{tpu_custom_call.1} parent=1 // pred_check
      _
    $region3: #{tpu_custom_call.1} parent=1 // pred_check_branch
      %11 = sbr.rel (0) target = $region5
    $region4: #{tpu_custom_call.1} parent=1 // pred_region
      %s13 = ssub.s32 128, 128
      %14 = vsyncadd [#allocation3], %s13
      %s16 = sshll.u32 [#allocation2], 4
      %s17 = int_to_ptr.vmem [resolvable:$true] %s16
      %19 = dma.hbm_to_vmem [thread:$0]  %s0, 128, %s17, [#allocation3]
    $region5: #{tpu_custom_call.1} parent=1 // pred_fallthru
      _
    // Predicated region
    $region6: #{tpu_custom_call.1} parent=1 // pred_check
      _
    $region7: #{tpu_custom_call.1} parent=1 // pred_check_branch
      %21 = sbr.rel (0) target = $region9
    $region8: #{tpu_custom_call.1} parent=1 // pred_region
      %s23 = ssub.s32 2048, 2048
      %24 = vsyncadd [#allocation6], %s23
      %s25 = sshll.u32 [#allocation5], 4
      %s26 = int_to_ptr.vmem [resolvable:$true] %s25
      %31 = dma.hbm_to_vmem [thread:$0]  %s1, 2048, %s26, [#allocation6], 128, 128, 8
    $region9: #{tpu_custom_call.1} parent=1 // pred_fallthru
      _
    // Predicated region
    $region10: #{tpu_custom_call.1} parent=1 // pred_check
      _
    $region11: #{tpu_custom_call.1} parent=1 // pred_check_branch
      %33 = sbr.rel (0) target = $region13
    $region12: #{tpu_custom_call.1} parent=1 // pred_region
      %34 = dma.done [#allocation3], 128
    $region13: #{tpu_custom_call.1} parent=1 // pred_fallthru
      _
    // Predicated region
    $region14: #{tpu_custom_call.1} parent=1 // pred_check
      _
    $region15: #{tpu_custom_call.1} parent=1 // pred_check_branch
      %36 = sbr.rel (0) target = $region17
    $region16: #{tpu_custom_call.1} parent=1 // pred_region
      %37 = dma.done [#allocation6], 2048
    $region17: #{tpu_custom_call.1} parent=1 // pred_fallthru
      _
    %p38 = scmp.eq.s32.totalorder 0, 0
    // Predicated region
    $region18: #{tpu_custom_call.1} parent=1 // pred_check
      %p39 = pneg %p38
    $region19: #{tpu_custom_call.1} parent=1 // pred_check_branch
      %41 = sbr.rel (%p39) target = $region21
    $region20: #{tpu_custom_call.1} parent=1 // pred_region
      %42 = vst [vmem:[#allocation7] sm:$0xff] 0.0
    $region21: #{tpu_custom_call.1} parent=1 // pred_fallthru
      _
    %v43 = vld [vmem:[#allocation7] sm:$0xff]
    %v44 = vld [vmem:[#allocation2] sm:$0xff]
    %v45 = vld [vmem:[#allocation5] sm:$0xff]
    %v46 = vld [vmem:[#allocation5 + $0x8] sm:$0xff]
    %v47 = vld [vmem:[#allocation5 + $0x10] sm:$0xff]
    %v48 = vld [vmem:[#allocation5 + $0x18] sm:$0xff]
    %v49 = vld [vmem:[#allocation5 + $0x20] sm:$0xff]
    %v50 = vld [vmem:[#allocation5 + $0x28] sm:$0xff]
    %v51 = vld [vmem:[#allocation5 + $0x30] sm:$0xff]
    %v52 = vld [vmem:[#allocation5 + $0x38] sm:$0xff]
    %v53 = vld [vmem:[#allocation5 + $0x40] sm:$0xff]
    %v54 = vld [vmem:[#allocation5 + $0x48] sm:$0xff]
    %v55 = vld [vmem:[#allocation5 + $0x50] sm:$0xff]
    %v56 = vld [vmem:[#allocation5 + $0x58] sm:$0xff]
    %v57 = vld [vmem:[#allocation5 + $0x60] sm:$0xff]
    %v58 = vld [vmem:[#allocation5 + $0x68] sm:$0xff]
    %v59 = vld [vmem:[#allocation5 + $0x70] sm:$0xff]
    %v60 = vld [vmem:[#allocation5 + $0x78] sm:$0xff]
    %61 = vmatprep.subr.mxu0 0.0
    %62 = vmatpush1.msra.mxu0 %v60
    %63 = vmatprep.subr.mxu0 0.0
    %64 = vmatpush1.msra.mxu0 %v59
    %65 = vmatprep.subr.mxu0 0.0
    %66 = vmatpush1.msra.mxu0 %v58
    %67 = vmatprep.subr.mxu0 0.0
    %68 = vmatpush1.msra.mxu0 %v57
    %69 = vmatprep.subr.mxu0 0.0
    %70 = vmatpush1.msra.mxu0 %v56
    %71 = vmatprep.subr.mxu0 0.0
    %72 = vmatpush1.msra.mxu0 %v55
    %73 = vmatprep.subr.mxu0 0.0
    %74 = vmatpush1.msra.mxu0 %v54
    %75 = vmatprep.subr.mxu0 0.0
    %76 = vmatpush1.msra.mxu0 %v53
    %77 = vmatprep.subr.mxu0 0.0
    %78 = vmatpush1.msra.mxu0 %v52
    %79 = vmatprep.subr.mxu0 0.0
    %80 = vmatpush1.msra.mxu0 %v51
    %81 = vmatprep.subr.mxu0 0.0
    %82 = vmatpush1.msra.mxu0 %v50
    %83 = vmatprep.subr.mxu0 0.0
    %84 = vmatpush1.msra.mxu0 %v49
    %85 = vmatprep.subr.mxu0 0.0
    %86 = vmatpush1.msra.mxu0 %v48
    %87 = vmatprep.subr.mxu0 0.0
    %88 = vmatpush1.msra.mxu0 %v47
    %89 = vmatprep.subr.mxu0 0.0
    %90 = vmatpush1.msra.mxu0 %v46
    %91 = vmatprep.subr.mxu0 0.0
    %92 = vmatpush1.msra.mxu0 %v45
    %93 = vmatprep.subr.mxu0 0.0
    %94 = vmatpush2.msra.mxu0 0.0
    %95 = vmatprep.subr.mxu0 0.0
    %96 = vmatpush2.msra.mxu0 0.0
    %97 = vmatprep.subr.mxu0 0.0
    %98 = vmatpush2.msra.mxu0 0.0
    %99 = vmatprep.subr.mxu0 0.0
    %100 = vmatpush2.msra.mxu0 0.0
    %101 = vmatprep.subr.mxu0 0.0
    %102 = vmatpush2.msra.mxu0 0.0
    %103 = vmatprep.subr.mxu0 0.0
    %104 = vmatpush2.msra.mxu0 0.0
    %105 = vmatprep.subr.mxu0 0.0
    %106 = vmatpush2.msra.mxu0 0.0
    %107 = vmatprep.subr.mxu0 0.0
    %108 = vmatpush2.msra.mxu0 0.0
    %109 = vmatprep.subr.mxu0 0.0
    %110 = vmatpush2.msra.mxu0 0.0
    %111 = vmatprep.subr.mxu0 0.0
    %112 = vmatpush2.msra.mxu0 0.0
    %113 = vmatprep.subr.mxu0 0.0
    %114 = vmatpush2.msra.mxu0 0.0
    %115 = vmatprep.subr.mxu0 0.0
    %116 = vmatpush2.msra.mxu0 0.0
    %117 = vmatprep.subr.mxu0 0.0
    %118 = vmatpush2.msra.mxu0 0.0
    %119 = vmatprep.subr.mxu0 0.0
    %120 = vmatpush2.msra.mxu0 0.0
    %121 = vmatprep.subr.mxu0 0.0
    %122 = vmatpush2.msra.mxu0 0.0
    %123 = vmatprep.subr.mxu0 0.0
    %124 = vmatpush2.msra.mxu0 0.0
    %125 = vmatprep.mubr.f32.mxu0 0.0
    %126 = vmatmul.mubr.f32.gmra.mxu0 %v44
    %v127 = vpop.f32.mrf.mxu0
    %v128 = vadd.f32 0.0, %v127
    %v129 = vpop.f32.mrf.mxu0
    %130 = vdwg.mxu0
    %v131 = vadd.f32 %v43, %v128
    %132 = vst [vmem:[#allocation7] sm:$0xff] %v131
    // Predicated region
    $region22: #{tpu_custom_call.1} parent=1 // pred_check
      _
    $region23: #{tpu_custom_call.1} parent=1 // pred_check_branch
      %134 = sbr.rel (0) target = $region25
    $region24: #{tpu_custom_call.1} parent=1 // pred_region
      %s136 = ssub.s32 128, 128
      %137 = vsyncadd [#allocation4], %s136
      %s139 = sshll.u32 [#allocation7], 4
      %s140 = int_to_ptr.vmem [resolvable:$true] %s139
      %142 = dma.vmem_to_hbm [thread:$0]  %s140, 128, %s2, [#allocation4]
    $region25: #{tpu_custom_call.1} parent=1 // pred_fallthru
      _
    // Predicated region
    $region26: #{tpu_custom_call.1} parent=1 // pred_check
      _
    $region27: #{tpu_custom_call.1} parent=1 // pred_check_branch
      %144 = sbr.rel (0) target = $region29
    $region28: #{tpu_custom_call.1} parent=1 // pred_region
      %145 = dma.done [#allocation4], 128
    $region29: #{tpu_custom_call.1} parent=1 // pred_fallthru
      _
    %146 = vsyncpa [#allocation3], 1
    %147 = vsyncpa [#allocation6], 1
    %148 = vsyncpa [#allocation4], 1

</llo_original>
